<compile_context>
chip_gen: v5e
topology: v5e:2x2
jax: 0.10.0
libtpu: 0.0.40
codegen_flags: <defaults>
</compile_context>

<pallas_src>
import jax
import jax.numpy as jnp
from jax.experimental import pallas as pl
from jax.experimental.pallas import tpu as pltpu

DIMS = [10, 128, 64, 32, 16, 1]  # layer widths of the PyTorch module


def _round_up(v, m):
    return ((v + m - 1) // m) * m


def regressor_kernel(x_ref, w1_ref, w2_ref, w3_ref, w4_ref, bw_ref, o_ref):
    # Hoist bias / W5 rows once (JAX does not CSE broadcast_in_dim).
    bw = bw_ref[...]                    # (8, 128) f32
    b1 = bw[0:1, :]                     # (1, 128)
    b2 = bw[1:2, :64]                   # (1, 64)
    b3 = bw[2:3, :32]                   # (1, 32)
    b4 = bw[3:4, :16]                   # (1, 16)
    b5 = bw[4:5, 0:1]                   # (1, 1)
    w5r = bw[5:6, :16]                  # (1, 16) = W5^T row (zero-padded slab row)

    cd = w1_ref.dtype                   # MXU compute dtype (f32 or optional bf16)
    x = x_ref[...].astype(cd)           # (TB, 16) -- cols >= 10 are zero

    # Layer 1: (TB,16) @ (16,128) + b1 -> ReLU
    h = jnp.dot(x, w1_ref[...], preferred_element_type=jnp.float32)
    h = jnp.maximum(h + b1, 0.0)
    # Layer 2: (TB,128) @ (128,64)
    h = jnp.dot(h.astype(cd), w2_ref[...], preferred_element_type=jnp.float32)
    h = jnp.maximum(h + b2, 0.0)
    # Layer 3: (TB,64) @ (64,32)
    h = jnp.dot(h.astype(cd), w3_ref[...], preferred_element_type=jnp.float32)
    h = jnp.maximum(h + b3, 0.0)
    # Layer 4: (TB,32) @ (32,16)
    h = jnp.dot(h.astype(cd), w4_ref[...], preferred_element_type=jnp.float32)
    h = jnp.maximum(h + b4, 0.0)        # (TB, 16)
    # Layer 5 (out_features=1): VPU multiply + XLU lane reduce instead of a
    # serialized N=1 MXU matmul at the tail of the dependency chain.
    out = jnp.sum(h * w5r, axis=-1, keepdims=True) + b5
    o_ref[...] = out.astype(o_ref.dtype)


def pack_params(params, *, mxu_dtype=jnp.float32):
    """Pack [(W, b)] (W: (in,out), b: (1,out)) into real-shaped weights + a bias slab.

    Returns:
      ws: [W1 (16,128), W2 (128,64), W3 (64,32), W4 (32,16)] in `mxu_dtype`
          (W1's input rows zero-padded to a multiple of 8).
      bw_slab: (8,128) f32 -- rows 0..3 = b1..b4 (zero-padded lanes),
          row 4 col 0 = b5, row 5 lanes 0..15 = W5[:, 0].
    """
    ws = []
    for i, (W, _) in enumerate(params[:4]):
        W = W.astype(jnp.float32)
        if i == 0:  # pad input-feature rows (10 -> 16) so the contraction is aligned
            fi, fo = W.shape
            fi_pad = _round_up(fi, 8)
            W = jnp.zeros((fi_pad, fo), jnp.float32).at[:fi, :].set(W)
        ws.append(W.astype(mxu_dtype))

    bw = jnp.zeros((8, 128), jnp.float32)
    for i, (_, b) in enumerate(params[:4]):
        bw = bw.at[i, : b.shape[1]].set(b[0].astype(jnp.float32))
    W5, b5 = params[4]
    bw = bw.at[4, 0].set(b5[0, 0].astype(jnp.float32))
    bw = bw.at[5, : W5.shape[0]].set(W5[:, 0].astype(jnp.float32))
    return ws, bw


def regressor_forward(x, ws, bw_slab, *, block_batch=2048):
    """x: (B, input_features) f32.  Returns (B, 1) f32."""
    B, F = x.shape
    w1, w2, w3, w4 = ws
    F_pad = w1.shape[0]
    assert F <= F_pad, "input_features must fit the packed W1 rows"

    # Batch tile: multiple of 8, capped by block_batch; also capped so the grid
    # has >= 2 steps whenever B allows it (lets v7x use both TensorCores).
    TB = min(block_batch, _round_up(B, 8))
    if B > 8:
        TB = min(TB, _round_up((B + 1) // 2, 8))
    TB = max(8, _round_up(TB, 8))
    B_pad = _round_up(B, TB)

    x_pad = x.astype(jnp.float32)
    if B_pad != B or F_pad != F:
        x_pad = jnp.pad(x_pad, ((0, B_pad - B), (0, F_pad - F)))

    flops = 2 * B * (F * 128 + 128 * 64 + 64 * 32 + 32 * 16 + 16 * 1)
    bytes_accessed = (
        x_pad.size * 4 + B_pad * 4
        + sum(int(w.size) * w.dtype.itemsize for w in ws)
        + int(bw_slab.size) * 4
    )

    const2 = lambda i: (0, 0)  # VMEM-resident params: constant block index
    grid = (B_pad // TB,)

    out = pl.pallas_call(
        regressor_kernel,
        out_shape=jax.ShapeDtypeStruct((B_pad, 1), jnp.float32),
        grid_spec=pltpu.PrefetchScalarGridSpec(
            num_scalar_prefetch=0,
            grid=grid,
            in_specs=[
                # Batch-tiled input at real (16-lane) width, double-buffered.
                pl.BlockSpec((TB, F_pad), lambda i: (i, 0)),
                # Real-shaped weights, resident in VMEM across all grid steps.
                pl.BlockSpec(w1.shape, const2),
                pl.BlockSpec(w2.shape, const2),
                pl.BlockSpec(w3.shape, const2),
                pl.BlockSpec(w4.shape, const2),
                # Bias + W5-row slab.
                pl.BlockSpec(bw_slab.shape, const2),
            ],
            out_specs=pl.BlockSpec((TB, 1), lambda i: (i, 0)),
        ),
        compiler_params=pltpu.CompilerParams(
            dimension_semantics=("parallel",),
        ),
        cost_estimate=pl.CostEstimate(
            flops=int(flops),
            transcendentals=0,
            bytes_accessed=int(bytes_accessed),
        ),
    )(x_pad, w1, w2, w3, w4, bw_slab)
    return out[:B]


def init_params(key, dims):
    """Deterministic init mimicking torch.nn.Linear's U(-1/sqrt(fan_in), +)."""
    params = []
    for i, (fan_in, fan_out) in enumerate(zip(dims[:-1], dims[1:])):
        kw, kb = jax.random.split(jax.random.fold_in(key, i))
        bound = 1.0 / jnp.sqrt(jnp.float32(fan_in))
        W = jax.random.uniform(kw, (fan_in, fan_out), jnp.float32, -bound, bound)
        b = jax.random.uniform(kb, (1, fan_out), jnp.float32, -bound, bound)
        params.append((W, b))
    return params


def reference_forward(x, params):
    h = x
    for i, (W, b) in enumerate(params):
        h = h @ W + b
        if i < len(params) - 1:
            h = jnp.maximum(h, 0.0)
    return h


if __name__ == "__main__":
    key = jax.random.PRNGKey(0)
    k_x, k_p = jax.random.split(key)

    batch = 16
    input_features = DIMS[0]

    x = jax.random.normal(k_x, (batch, input_features), dtype=jnp.float32)
    params = init_params(k_p, DIMS)
    ws, bw_slab = pack_params(params)  # f32 MXU path (exact vs reference)

    # Default block_batch=2048; the >=2-step cap makes this a 2-step grid even
    # at batch=16, exercising the batch-tiled pipeline.
    out = regressor_forward(x, ws, bw_slab)
    out = jax.block_until_ready(out)

    ref = reference_forward(x, params)
    assert out.shape == (batch, 1), out.shape
    assert jnp.allclose(out, ref, atol=1e-5, rtol=1e-5), "mismatch vs reference"

    print("KERNEL_OK")
</pallas_src>

<mosaic_0001>
module attributes {stable_mosaic.version = 11 : i64} {
  func.func @regressor_kernel(%arg0: i32, %arg1: memref<8x16xf32, #tpu.memory_space<vmem>>, %arg2: memref<16x128xf32, #tpu.memory_space<vmem>>, %arg3: memref<128x64xf32, #tpu.memory_space<vmem>>, %arg4: memref<64x32xf32, #tpu.memory_space<vmem>>, %arg5: memref<32x16xf32, #tpu.memory_space<vmem>>, %arg6: memref<8x128xf32, #tpu.memory_space<vmem>>, %arg7: memref<8x1xf32, #tpu.memory_space<vmem>>) attributes {dimension_semantics = [#tpu.dimension_semantics<parallel>], iteration_bounds = array<i64: 2>, scalar_prefetch = 0 : i64, scratch_operands = 0 : i64, tpu.core_type = #tpu.core_type<tc>, window_params = [{transform_indices = @transform_0, window_bounds = array<i64: 8, 16>}, {pipeline_mode = #tpu.pipeline_mode<synchronous>, transform_indices = @transform_1, window_bounds = array<i64: 16, 128>}, {pipeline_mode = #tpu.pipeline_mode<synchronous>, transform_indices = @transform_2, window_bounds = array<i64: 128, 64>}, {pipeline_mode = #tpu.pipeline_mode<synchronous>, transform_indices = @transform_3, window_bounds = array<i64: 64, 32>}, {pipeline_mode = #tpu.pipeline_mode<synchronous>, transform_indices = @transform_4, window_bounds = array<i64: 32, 16>}, {pipeline_mode = #tpu.pipeline_mode<synchronous>, transform_indices = @transform_5, window_bounds = array<i64: 8, 128>}, {transform_indices = @transform_6, window_bounds = array<i64: 8, 1>}]} {
    %c0 = arith.constant 0 : index
    %c0_0 = arith.constant 0 : index
    %0 = vector.load %arg6[%c0, %c0_0] : memref<8x128xf32, #tpu.memory_space<vmem>>, vector<8x128xf32>
    %1 = vector.extract_strided_slice %0 {offsets = [0, 0], sizes = [1, 128], strides = [1, 1]} : vector<8x128xf32> to vector<1x128xf32>
    %2 = vector.extract_strided_slice %0 {offsets = [1, 0], sizes = [1, 64], strides = [1, 1]} : vector<8x128xf32> to vector<1x64xf32>
    %3 = vector.extract_strided_slice %0 {offsets = [2, 0], sizes = [1, 32], strides = [1, 1]} : vector<8x128xf32> to vector<1x32xf32>
    %4 = vector.extract_strided_slice %0 {offsets = [3, 0], sizes = [1, 16], strides = [1, 1]} : vector<8x128xf32> to vector<1x16xf32>
    %5 = vector.extract_strided_slice %0 {offsets = [4, 0], sizes = [1, 1], strides = [1, 1]} : vector<8x128xf32> to vector<1x1xf32>
    %6 = vector.extract_strided_slice %0 {offsets = [5, 0], sizes = [1, 16], strides = [1, 1]} : vector<8x128xf32> to vector<1x16xf32>
    %c0_1 = arith.constant 0 : index
    %c0_2 = arith.constant 0 : index
    %7 = vector.load %arg1[%c0_1, %c0_2] : memref<8x16xf32, #tpu.memory_space<vmem>>, vector<8x16xf32>
    %c0_3 = arith.constant 0 : index
    %c0_4 = arith.constant 0 : index
    %8 = vector.load %arg2[%c0_3, %c0_4] : memref<16x128xf32, #tpu.memory_space<vmem>>, vector<16x128xf32>
    %cst = arith.constant dense<0.000000e+00> : vector<8x128xf32>
    %9 = tpu.matmul %7, %8, %cst {dimension_numbers = #tpu.dot_dimension_numbers<[1], [0], [0], [1], [0, 0, 1, 1], [], []>} : vector<8x16xf32>, vector<16x128xf32>, vector<8x128xf32> -> vector<8x128xf32>
    %10 = vector.broadcast %1 : vector<1x128xf32> to vector<8x128xf32>
    %11 = arith.addf %9, %10 : vector<8x128xf32>
    %cst_5 = arith.constant 0.000000e+00 : f32
    %12 = vector.broadcast %cst_5 : f32 to vector<8x128xf32>
    %13 = arith.maximumf %11, %12 : vector<8x128xf32>
    %c0_6 = arith.constant 0 : index
    %c0_7 = arith.constant 0 : index
    %14 = vector.load %arg3[%c0_6, %c0_7] : memref<128x64xf32, #tpu.memory_space<vmem>>, vector<128x64xf32>
    %cst_8 = arith.constant dense<0.000000e+00> : vector<8x64xf32>
    %15 = tpu.matmul %13, %14, %cst_8 {dimension_numbers = #tpu.dot_dimension_numbers<[1], [0], [0], [1], [0, 0, 1, 1], [], []>} : vector<8x128xf32>, vector<128x64xf32>, vector<8x64xf32> -> vector<8x64xf32>
    %16 = vector.broadcast %2 : vector<1x64xf32> to vector<8x64xf32>
    %17 = arith.addf %15, %16 : vector<8x64xf32>
    %cst_9 = arith.constant 0.000000e+00 : f32
    %18 = vector.broadcast %cst_9 : f32 to vector<8x64xf32>
    %19 = arith.maximumf %17, %18 : vector<8x64xf32>
    %c0_10 = arith.constant 0 : index
    %c0_11 = arith.constant 0 : index
    %20 = vector.load %arg4[%c0_10, %c0_11] : memref<64x32xf32, #tpu.memory_space<vmem>>, vector<64x32xf32>
    %cst_12 = arith.constant dense<0.000000e+00> : vector<8x32xf32>
    %21 = tpu.matmul %19, %20, %cst_12 {dimension_numbers = #tpu.dot_dimension_numbers<[1], [0], [0], [1], [0, 0, 1, 1], [], []>} : vector<8x64xf32>, vector<64x32xf32>, vector<8x32xf32> -> vector<8x32xf32>
    %22 = vector.broadcast %3 : vector<1x32xf32> to vector<8x32xf32>
    %23 = arith.addf %21, %22 : vector<8x32xf32>
    %cst_13 = arith.constant 0.000000e+00 : f32
    %24 = vector.broadcast %cst_13 : f32 to vector<8x32xf32>
    %25 = arith.maximumf %23, %24 : vector<8x32xf32>
    %c0_14 = arith.constant 0 : index
    %c0_15 = arith.constant 0 : index
    %26 = vector.load %arg5[%c0_14, %c0_15] : memref<32x16xf32, #tpu.memory_space<vmem>>, vector<32x16xf32>
    %cst_16 = arith.constant dense<0.000000e+00> : vector<8x16xf32>
    %27 = tpu.matmul %25, %26, %cst_16 {dimension_numbers = #tpu.dot_dimension_numbers<[1], [0], [0], [1], [0, 0, 1, 1], [], []>} : vector<8x32xf32>, vector<32x16xf32>, vector<8x16xf32> -> vector<8x16xf32>
    %28 = vector.broadcast %4 : vector<1x16xf32> to vector<8x16xf32>
    %29 = arith.addf %27, %28 : vector<8x16xf32>
    %cst_17 = arith.constant 0.000000e+00 : f32
    %30 = vector.broadcast %cst_17 : f32 to vector<8x16xf32>
    %31 = arith.maximumf %29, %30 : vector<8x16xf32>
    %32 = vector.broadcast %6 : vector<1x16xf32> to vector<8x16xf32>
    %33 = arith.mulf %31, %32 : vector<8x16xf32>
    %cst_18 = arith.constant dense<0.000000e+00> : vector<8xf32>
    %34 = vector.multi_reduction <add>, %33, %cst_18 [1] : vector<8x16xf32> to vector<8xf32>
    %35 = vector.shape_cast %34 : vector<8xf32> to vector<8x1xf32>
    %36 = vector.broadcast %5 : vector<1x1xf32> to vector<8x1xf32>
    %37 = arith.addf %35, %36 : vector<8x1xf32>
    %c0_19 = arith.constant 0 : index
    %c0_20 = arith.constant 0 : index
    %38 = vector.load %arg7[%c0_19, %c0_20] : memref<8x1xf32, #tpu.memory_space<vmem>>, vector<8x1xf32>
    tpu.vector_store %arg7[%c0_19, %c0_20], %37 {strides = array<i32>} : memref<8x1xf32, #tpu.memory_space<vmem>>, vector<8x1xf32>,
    return
  }
  func.func @transform_0(%arg0: i32) -> (i32, i32) {
    %c0_i32 = arith.constant 0 : i32
    %c0_i32_0 = arith.constant 0 : i32
    return %arg0, %c0_i32 : i32, i32
  }
  func.func @transform_1(%arg0: i32) -> (i32, i32) {
    %c0_i32 = arith.constant 0 : i32
    %c0_i32_0 = arith.constant 0 : i32
    %c0_i32_1 = arith.constant 0 : i32
    return %c0_i32, %c0_i32_0 : i32, i32
  }
  func.func @transform_2(%arg0: i32) -> (i32, i32) {
    %c0_i32 = arith.constant 0 : i32
    %c0_i32_0 = arith.constant 0 : i32
    %c0_i32_1 = arith.constant 0 : i32
    return %c0_i32, %c0_i32_0 : i32, i32
  }
  func.func @transform_3(%arg0: i32) -> (i32, i32) {
    %c0_i32 = arith.constant 0 : i32
    %c0_i32_0 = arith.constant 0 : i32
    %c0_i32_1 = arith.constant 0 : i32
    return %c0_i32, %c0_i32_0 : i32, i32
  }
  func.func @transform_4(%arg0: i32) -> (i32, i32) {
    %c0_i32 = arith.constant 0 : i32
    %c0_i32_0 = arith.constant 0 : i32
    %c0_i32_1 = arith.constant 0 : i32
    return %c0_i32, %c0_i32_0 : i32, i32
  }
  func.func @transform_5(%arg0: i32) -> (i32, i32) {
    %c0_i32 = arith.constant 0 : i32
    %c0_i32_0 = arith.constant 0 : i32
    %c0_i32_1 = arith.constant 0 : i32
    return %c0_i32, %c0_i32_0 : i32, i32
  }
  func.func @transform_6(%arg0: i32) -> (i32, i32) {
    %c0_i32 = arith.constant 0 : i32
    %c0_i32_0 = arith.constant 0 : i32
    return %arg0, %c0_i32 : i32, i32
  }
}

</mosaic_0001>

<llo_original>
// kernel: tpu_custom_call.1
$region0: #{tpu_custom_call.1}
  #allocation0 [shape = 'u32[]', space=smem, size = 0x4, offset = 0x4, fixed_abs, tag = 'smem constant byte address 0x4 - core index']
  #allocation1 [shape = 'u32[72,128]{1,0:T(1,128)}', space=vmem, size = 0x9000, scoped, tag = 'internal scratch']
  %s0 = inlined_call_operand.vmem [shape: f32[16,16], index: 0, kind: input, shape index: {}]
  %s1 = inlined_call_operand.vmem [shape: f32[16,128], index: 1, kind: input, shape index: {}]
  %s2 = inlined_call_operand.vmem [shape: f32[128,64], index: 2, kind: input, shape index: {}]
  %s3 = inlined_call_operand.vmem [shape: f32[64,32], index: 3, kind: input, shape index: {}]
  %s4 = inlined_call_operand.vmem [shape: f32[32,16], index: 4, kind: input, shape index: {}]
  %s5 = inlined_call_operand.vmem [shape: f32[8,128], index: 5, kind: input, shape index: {}]
  %s6 = inlined_call_operand.vmem [shape: f32[16,1], index: 6, kind: output, shape index: {}]
  %s7 = sld [smem:[#allocation0]]
  $region57: #{tpu_custom_call.1} parent=0
    _
  %s9 = ssub.s32 1, %s7
  %s10 = scalar_select 0, %s9, %s7
  loop: start=0, step=1, limit=4
  $region2: #{tpu_custom_call.1} parent=0 // loop_pre_header
    _
  $region3: #{tpu_custom_call.1} parent=0 // loop_header
    %s12 = sphi 0, %s16
    %p13 = scmp.ge.s32.totalorder %s12, 4
    %s22 = sphi 0, %s24
    %s25 = sphi 0, %s22
    %s26 = sphi 0, %s25
    %s42 = sphi 0, %s26
    %s46 = sphi 0, %s46
    %s48 = sphi 0, %s46
    %s49 = sphi 0, %s48
    %s63 = sphi 0, %s49
    %s67 = sphi 0, %s67
    %s69 = sphi 0, %s67
    %s70 = sphi 0, %s69
    %s84 = sphi 0, %s70
    %s88 = sphi 0, %s88
    %s90 = sphi 0, %s88
    %s91 = sphi 0, %s90
    %s105 = sphi 0, %s91
    %s109 = sphi 0, %s109
    %s111 = sphi 0, %s109
    %s112 = sphi 0, %s111
    %s126 = sphi 0, %s112
    %s130 = sphi 0, %s130
    %s132 = sphi 0, %s130
    %s133 = sphi 0, %s132
    %s147 = sphi 0, %s133
    %s153 = sphi 0, %s155
    %s156 = sphi 0, %s153
    %s157 = sphi 0, %s156
    %s173 = sphi 0, %s157
  $region4: #{tpu_custom_call.1} parent=0 // loop_header_branch
    %15 = sbr.rel (%p13) target = $region8
  $region5: #{tpu_custom_call.1} parent=0 // loop_body
    %s17 = ssub.s32 %s12, 1
    %s18 = ssub.s32 %s12, 2
    %s19 = sadd.s32 %s12, 1
    %s20 = ssub.s32 %s12, %s19
    %p21 = scmp.eq.s32.totalorder %s20, 0
    %s23 = sadd.s32 %s22, 1
    %s24 = scalar_select %p21, %s22, %s23
    %p27 = pneg %p21
    %p28 = scmp.eq.s32.totalorder %s12, 1
    %p29 = por %p27, %p28
    %p30 = scmp.ne.s32.totalorder %s22, %s25
    %p31 = scmp.eq.s32.totalorder %s12, 0
    %p32 = por %p30, %p31
    %p33 = scmp.ne.s32.totalorder %s22, %s25
    %p34 = scmp.eq.s32.totalorder %s17, 1
    %p35 = por %p33, %p34
    %p36 = scmp.ne.s32.totalorder %s25, %s26
    %p37 = scmp.eq.s32.totalorder %s17, 0
    %p38 = por %p36, %p37
    %p39 = scmp.ne.s32.totalorder %s25, %s26
    %p40 = scmp.eq.s32.totalorder %s18, 1
    %p41 = por %p39, %p40
    %p43 = scmp.ne.s32.totalorder %s26, %s42
    %p44 = scmp.eq.s32.totalorder %s18, 0
    %p45 = por %p43, %p44
    %s47 = sadd.s32 %s46, 1
    %p50 = scmp.eq.s32.totalorder %s12, 1
    %p51 = scmp.ne.s32.totalorder %s46, %s48
    %p52 = scmp.eq.s32.totalorder %s12, 0
    %p53 = por %p51, %p52
    %p54 = scmp.ne.s32.totalorder %s46, %s48
    %p55 = scmp.eq.s32.totalorder %s17, 1
    %p56 = por %p54, %p55
    %p57 = scmp.ne.s32.totalorder %s48, %s49
    %p58 = scmp.eq.s32.totalorder %s17, 0
    %p59 = por %p57, %p58
    %p60 = scmp.ne.s32.totalorder %s48, %s49
    %p61 = scmp.eq.s32.totalorder %s18, 1
    %p62 = por %p60, %p61
    %p64 = scmp.ne.s32.totalorder %s49, %s63
    %p65 = scmp.eq.s32.totalorder %s18, 0
    %p66 = por %p64, %p65
    %s68 = sadd.s32 %s67, 1
    %p71 = scmp.eq.s32.totalorder %s12, 1
    %p72 = scmp.ne.s32.totalorder %s67, %s69
    %p73 = scmp.eq.s32.totalorder %s12, 0
    %p74 = por %p72, %p73
    %p75 = scmp.ne.s32.totalorder %s67, %s69
    %p76 = scmp.eq.s32.totalorder %s17, 1
    %p77 = por %p75, %p76
    %p78 = scmp.ne.s32.totalorder %s69, %s70
    %p79 = scmp.eq.s32.totalorder %s17, 0
    %p80 = por %p78, %p79
    %p81 = scmp.ne.s32.totalorder %s69, %s70
    %p82 = scmp.eq.s32.totalorder %s18, 1
    %p83 = por %p81, %p82
    %p85 = scmp.ne.s32.totalorder %s70, %s84
    %p86 = scmp.eq.s32.totalorder %s18, 0
    %p87 = por %p85, %p86
    %s89 = sadd.s32 %s88, 1
    %p92 = scmp.eq.s32.totalorder %s12, 1
    %p93 = scmp.ne.s32.totalorder %s88, %s90
    %p94 = scmp.eq.s32.totalorder %s12, 0
    %p95 = por %p93, %p94
    %p96 = scmp.ne.s32.totalorder %s88, %s90
    %p97 = scmp.eq.s32.totalorder %s17, 1
    %p98 = por %p96, %p97
    %p99 = scmp.ne.s32.totalorder %s90, %s91
    %p100 = scmp.eq.s32.totalorder %s17, 0
    %p101 = por %p99, %p100
    %p102 = scmp.ne.s32.totalorder %s90, %s91
    %p103 = scmp.eq.s32.totalorder %s18, 1
    %p104 = por %p102, %p103
    %p106 = scmp.ne.s32.totalorder %s91, %s105
    %p107 = scmp.eq.s32.totalorder %s18, 0
    %p108 = por %p106, %p107
    %s110 = sadd.s32 %s109, 1
    %p113 = scmp.eq.s32.totalorder %s12, 1
    %p114 = scmp.ne.s32.totalorder %s109, %s111
    %p115 = scmp.eq.s32.totalorder %s12, 0
    %p116 = por %p114, %p115
    %p117 = scmp.ne.s32.totalorder %s109, %s111
    %p118 = scmp.eq.s32.totalorder %s17, 1
    %p119 = por %p117, %p118
    %p120 = scmp.ne.s32.totalorder %s111, %s112
    %p121 = scmp.eq.s32.totalorder %s17, 0
    %p122 = por %p120, %p121
    %p123 = scmp.ne.s32.totalorder %s111, %s112
    %p124 = scmp.eq.s32.totalorder %s18, 1
    %p125 = por %p123, %p124
    %p127 = scmp.ne.s32.totalorder %s112, %s126
    %p128 = scmp.eq.s32.totalorder %s18, 0
    %p129 = por %p127, %p128
    %s131 = sadd.s32 %s130, 1
    %p134 = scmp.eq.s32.totalorder %s12, 1
    %p135 = scmp.ne.s32.totalorder %s130, %s132
    %p136 = scmp.eq.s32.totalorder %s12, 0
    %p137 = por %p135, %p136
    %p138 = scmp.ne.s32.totalorder %s130, %s132
    %p139 = scmp.eq.s32.totalorder %s17, 1
    %p140 = por %p138, %p139
    %p141 = scmp.ne.s32.totalorder %s132, %s133
    %p142 = scmp.eq.s32.totalorder %s17, 0
    %p143 = por %p141, %p142
    %p144 = scmp.ne.s32.totalorder %s132, %s133
    %p145 = scmp.eq.s32.totalorder %s18, 1
    %p146 = por %p144, %p145
    %p148 = scmp.ne.s32.totalorder %s133, %s147
    %p149 = scmp.eq.s32.totalorder %s18, 0
    %p150 = por %p148, %p149
    %s151 = ssub.s32 %s12, %s19
    %p152 = scmp.eq.s32.totalorder %s151, 0
    %s154 = sadd.s32 %s153, 1
    %s155 = scalar_select %p152, %s153, %s154
    %p158 = pneg %p152
    %p159 = scmp.eq.s32.totalorder %s12, 1
    %p160 = por %p158, %p159
    %p161 = scmp.ne.s32.totalorder %s153, %s156
    %p162 = scmp.eq.s32.totalorder %s12, 0
    %p163 = por %p161, %p162
    %p164 = scmp.ne.s32.totalorder %s153, %s156
    %p165 = scmp.eq.s32.totalorder %s17, 1
    %p166 = por %p164, %p165
    %p167 = scmp.ne.s32.totalorder %s156, %s157
    %p168 = scmp.eq.s32.totalorder %s17, 0
    %p169 = por %p167, %p168
    %p170 = scmp.ne.s32.totalorder %s156, %s157
    %p171 = scmp.eq.s32.totalorder %s18, 1
    %p172 = por %p170, %p171
    %p174 = scmp.ne.s32.totalorder %s157, %s173
    %p175 = scmp.eq.s32.totalorder %s18, 0
    %p176 = por %p174, %p175
    %p177 = scmp.le.s32.totalorder 1, %s12
    %p178 = scmp.lt.s32.totalorder %s12, 3
    %p179 = pnand %p177, %p178
    %p180 = pneg %p179
    // Predicated region
    $region9: #{tpu_custom_call.1} parent=5 // pred_check
      _
    $region10: #{tpu_custom_call.1} parent=5 // pred_check_branch
      %182 = sbr.rel (%p179) target = $region12
    $region11: #{tpu_custom_call.1} parent=5 // pred_region
      %s183 = ssub.s32 %s12, 1
      // Predicated region
      $region13: #{tpu_custom_call.1} parent=11 // pred_check
        %p184 = pneg %p59
      $region14: #{tpu_custom_call.1} parent=11 // pred_check_branch
        %186 = sbr.rel (%p184) target = $region16
      $region15: #{tpu_custom_call.1} parent=11 // pred_region
        _
      $region16: #{tpu_custom_call.1} parent=11 // pred_fallthru
        _
      // Predicated region
      $region17: #{tpu_custom_call.1} parent=11 // pred_check
        %p187 = pneg %p80
      $region18: #{tpu_custom_call.1} parent=11 // pred_check_branch
        %189 = sbr.rel (%p187) target = $region20
      $region19: #{tpu_custom_call.1} parent=11 // pred_region
        _
      $region20: #{tpu_custom_call.1} parent=11 // pred_fallthru
        _
      // Predicated region
      $region21: #{tpu_custom_call.1} parent=11 // pred_check
        %p190 = pneg %p101
      $region22: #{tpu_custom_call.1} parent=11 // pred_check_branch
        %192 = sbr.rel (%p190) target = $region24
      $region23: #{tpu_custom_call.1} parent=11 // pred_region
        _
      $region24: #{tpu_custom_call.1} parent=11 // pred_fallthru
        _
      // Predicated region
      $region25: #{tpu_custom_call.1} parent=11 // pred_check
        %p193 = pneg %p122
      $region26: #{tpu_custom_call.1} parent=11 // pred_check_branch
        %195 = sbr.rel (%p193) target = $region28
      $region27: #{tpu_custom_call.1} parent=11 // pred_region
        _
      $region28: #{tpu_custom_call.1} parent=11 // pred_fallthru
        _
      // Predicated region
      $region29: #{tpu_custom_call.1} parent=11 // pred_check
        %p196 = pneg %p143
      $region30: #{tpu_custom_call.1} parent=11 // pred_check_branch
        %198 = sbr.rel (%p196) target = $region32
      $region31: #{tpu_custom_call.1} parent=11 // pred_region
        _
      $region32: #{tpu_custom_call.1} parent=11 // pred_fallthru
        _
    $region12: #{tpu_custom_call.1} parent=5 // pred_fallthru
      _
    %p199 = scmp.lt.s32.totalorder %s12, 2
    // Predicated region
    $region33: #{tpu_custom_call.1} parent=5 // pred_check
      %p200 = pneg %p199
    $region34: #{tpu_custom_call.1} parent=5 // pred_check_branch
      %202 = sbr.rel (%p200) target = $region36
    $region35: #{tpu_custom_call.1} parent=5 // pred_region
      // Predicated region
      $region37: #{tpu_custom_call.1} parent=35 // pred_check
        %p203 = pneg %p32
      $region38: #{tpu_custom_call.1} parent=35 // pred_check_branch
        %205 = sbr.rel (%p203) target = $region40
      $region39: #{tpu_custom_call.1} parent=35 // pred_region
        %p206 = scmp.lt.s32.totalorder %s12, 1
        %s207 = scalar_select %p206, %s12, 1
        %s208 = smul.addr %s207, 8
        %s209 = scalar_lea.vmem %s0, %s208
      $region40: #{tpu_custom_call.1} parent=35 // pred_fallthru
        _
    $region36: #{tpu_custom_call.1} parent=5 // pred_fallthru
      _
    %p210 = scmp.le.s32.totalorder 1, %s12
    %p211 = scmp.lt.s32.totalorder %s12, 3
    %p212 = pnand %p210, %p211
    %p213 = pneg %p212
    // Predicated region
    $region41: #{tpu_custom_call.1} parent=5 // pred_check
      _
    $region42: #{tpu_custom_call.1} parent=5 // pred_check_branch
      %215 = sbr.rel (%p212) target = $region44
    $region43: #{tpu_custom_call.1} parent=5 // pred_region
      %s216 = ssub.s32 %s12, 1
      %p217 = scmp.lt.s32.totalorder %s17, 1
      %s218 = scalar_select %p217, %s17, 1
      %s219 = smul.addr %s218, 8
      %s220 = scalar_lea.vmem %s0, %s219
      %p221 = pneg %p38
      %p222 = pneg %p35
      %p223 = pneg %p59
      %p224 = pneg %p56
      %p225 = pneg %p80
      %p226 = pneg %p77
      %p227 = pneg %p101
      %p228 = pneg %p98
      %p229 = pneg %p122
      %p230 = pneg %p119
      %p231 = pneg %p143
      %p232 = pneg %p140
      %p233 = pneg %p169
      %p234 = pneg %p166
      %p235 = scmp.lt.s32.totalorder %s17, 1
      %s236 = scalar_select %p235, %s17, 1
      %s237 = smul.addr %s236, 8
      %s238 = scalar_lea.vmem %s6, %s237
      %p239 = scmp.lt.s32.totalorder %s17, 1
      %s240 = scalar_select %p239, %s17, 1
      %s241 = smul.addr %s240, 8
      %s242 = scalar_lea.vmem %s0, %s241
      %p243 = scmp.lt.s32.totalorder %s17, 1
      %s244 = scalar_select %p243, %s17, 1
      %s245 = smul.addr %s244, 8
      %s246 = scalar_lea.vmem %s6, %s245
      %v247 = vld [vmem:[%s5] sm:$0xff]
      %v248 = vld [vmem:[%s242] sm:$0xff]
      %v249 = vld [vmem:[%s1] sm:$0xff]
      %v250 = vld [vmem:[%s1 + $0x8] sm:$0xff]
      %v251 = vperm.slane %v247, 0
      %vm252 = vcmask 130048
      %v254 = vsel %vm252, %v248, 0
      %256 = vmatpush.msra.mxu0 0.0
      %257 = vmatpush.msra.mxu0 0.0
      %258 = vmatpush.msra.mxu0 0.0
      %259 = vmatpush.msra.mxu0 0.0
      %260 = vmatpush.msra.mxu0 0.0
      %261 = vmatpush.msra.mxu0 0.0
      %262 = vmatpush.msra.mxu0 0.0
      %263 = vmatpush.msra.mxu0 0.0
      %264 = vmatpush.msra.mxu0 0.0
      %265 = vmatpush.msra.mxu0 0.0
      %266 = vmatpush.msra.mxu0 0.0
      %267 = vmatpush.msra.mxu0 0.0
      %268 = vmatpush.msra.mxu0 0.0
      %269 = vmatpush.msra.mxu0 0.0
      %270 = vmatpush.msra.mxu0 %v250
      %271 = vmatpush.msra.mxu0 %v249
      %272 = vmatmul.f32.gmra.mxu0 %v254
      %v273 = vpop.f32.mrf.mxu0
      %v274 = vadd.f32 %v251, %v273
      %275 = vdwg.mxu0
      %v276 = vmax.f32 %v274, 0.0
      %v277 = vld [vmem:[%s2] sm:$0xff]
      %v278 = vld [vmem:[%s2 + $0x8] sm:$0xff]
      %v279 = vld [vmem:[%s2 + $0x10] sm:$0xff]
      %v280 = vld [vmem:[%s2 + $0x18] sm:$0xff]
      %v281 = vld [vmem:[%s2 + $0x20] sm:$0xff]
      %v282 = vld [vmem:[%s2 + $0x28] sm:$0xff]
      %v283 = vld [vmem:[%s2 + $0x30] sm:$0xff]
      %v284 = vld [vmem:[%s2 + $0x38] sm:$0xff]
      %v285 = vld [vmem:[%s2 + $0x40] sm:$0xff]
      %v286 = vld [vmem:[%s2 + $0x48] sm:$0xff]
      %v287 = vld [vmem:[%s2 + $0x50] sm:$0xff]
      %v288 = vld [vmem:[%s2 + $0x58] sm:$0xff]
      %v289 = vld [vmem:[%s2 + $0x60] sm:$0xff]
      %v290 = vld [vmem:[%s2 + $0x68] sm:$0xff]
      %v291 = vld [vmem:[%s2 + $0x70] sm:$0xff]
      %v292 = vld [vmem:[%s2 + $0x78] sm:$0xff]
      %v293 = vperm.slane %v247, 1
      %294 = vmatpush.msra.mxu0 %v292
      %295 = vmatpush.msra.mxu0 %v291
      %296 = vmatpush.msra.mxu0 %v290
      %297 = vmatpush.msra.mxu0 %v289
      %298 = vmatpush.msra.mxu0 %v288
      %299 = vmatpush.msra.mxu0 %v287
      %300 = vmatpush.msra.mxu0 %v286
      %301 = vmatpush.msra.mxu0 %v285
      %302 = vmatpush.msra.mxu0 %v284
      %303 = vmatpush.msra.mxu0 %v283
      %304 = vmatpush.msra.mxu0 %v282
      %305 = vmatpush.msra.mxu0 %v281
      %306 = vmatpush.msra.mxu0 %v280
      %307 = vmatpush.msra.mxu0 %v279
      %308 = vmatpush.msra.mxu0 %v278
      %309 = vmatpush.msra.mxu0 %v277
      %310 = vmatmul.f32.gmra.mxu0 %v276
      %v311 = vpop.f32.mrf.mxu0
      %v312 = vadd.f32 %v293, %v311
      %313 = vdwg.mxu0
      %v314 = vmax.f32 %v312, 0.0
      %v315 = vld [vmem:[%s3] sm:$0xff]
      %v316 = vld [vmem:[%s3 + $0x8] sm:$0xff]
      %v317 = vld [vmem:[%s3 + $0x10] sm:$0xff]
      %v318 = vld [vmem:[%s3 + $0x18] sm:$0xff]
      %v319 = vld [vmem:[%s3 + $0x20] sm:$0xff]
      %v320 = vld [vmem:[%s3 + $0x28] sm:$0xff]
      %v321 = vld [vmem:[%s3 + $0x30] sm:$0xff]
      %v322 = vld [vmem:[%s3 + $0x38] sm:$0xff]
      %v323 = vperm.slane %v247, 2
      %vm324 = vcmask 523264
      %v326 = vsel %vm324, %v314, 0
      %328 = vmatpush.msra.mxu0 0.0
      %329 = vmatpush.msra.mxu0 0.0
      %330 = vmatpush.msra.mxu0 0.0
      %331 = vmatpush.msra.mxu0 0.0
      %332 = vmatpush.msra.mxu0 0.0
      %333 = vmatpush.msra.mxu0 0.0
      %334 = vmatpush.msra.mxu0 0.0
      %335 = vmatpush.msra.mxu0 0.0
      %336 = vmatpush.msra.mxu0 %v322
      %337 = vmatpush.msra.mxu0 %v321
      %338 = vmatpush.msra.mxu0 %v320
      %339 = vmatpush.msra.mxu0 %v319
      %340 = vmatpush.msra.mxu0 %v318
      %341 = vmatpush.msra.mxu0 %v317
      %342 = vmatpush.msra.mxu0 %v316
      %343 = vmatpush.msra.mxu0 %v315
      %344 = vmatmul.f32.gmra.mxu0 %v326
      %v345 = vpop.f32.mrf.mxu0
      %v346 = vadd.f32 %v323, %v345
      %347 = vdwg.mxu0
      %v348 = vmax.f32 %v346, 0.0
      %v349 = vld [vmem:[%s4] sm:$0xff]
      %v350 = vld [vmem:[%s4 + $0x8] sm:$0xff]
      %v351 = vld [vmem:[%s4 + $0x10] sm:$0xff]
      %v352 = vld [vmem:[%s4 + $0x18] sm:$0xff]
      %v353 = vperm.slane %v247, 3
      %vm354 = vcmask 261120
      %v356 = vsel %vm354, %v348, 0
      %358 = vmatpush.msra.mxu0 0.0
      %359 = vmatpush.msra.mxu0 0.0
      %360 = vmatpush.msra.mxu0 0.0
      %361 = vmatpush.msra.mxu0 0.0
      %362 = vmatpush.msra.mxu0 0.0
      %363 = vmatpush.msra.mxu0 0.0
      %364 = vmatpush.msra.mxu0 0.0
      %365 = vmatpush.msra.mxu0 0.0
      %366 = vmatpush.msra.mxu0 0.0
      %367 = vmatpush.msra.mxu0 0.0
      %368 = vmatpush.msra.mxu0 0.0
      %369 = vmatpush.msra.mxu0 0.0
      %370 = vmatpush.msra.mxu0 %v352
      %371 = vmatpush.msra.mxu0 %v351
      %372 = vmatpush.msra.mxu0 %v350
      %373 = vmatpush.msra.mxu0 %v349
      %374 = vmatmul.f32.gmra.mxu0 %v356
      %v375 = vpop.f32.mrf.mxu0
      %v376 = vadd.f32 %v353, %v375
      %377 = vdwg.mxu0
      %v378 = vmax.f32 %v376, 0.0
      %v379 = vperm.slane %v247, 5
      %v380 = vmul.f32 %v378, %v379
      %v381 = vsel %vm252, %v380, 0.0
      %382 = vadd.xlane.f32.xlu0 %v381
      %v383 = vpop.xlane.xlu0 %382
      %v384 = vperm.slane %v247, 4
      %v385 = vadd.f32 %v383, %v384
      %vm386 = vcmask 7168
      %387 = vst.msk [vmem:[%s246] sm:$0xff] %vm386, %v385
      %p388 = scmp.lt.s32.totalorder %s17, 1
      %s389 = scalar_select %p388, %s17, 1
      %s390 = smul.addr %s389, 8
      %s391 = scalar_lea.vmem %s6, %s390
      // Predicated region
      $region45: #{tpu_custom_call.1} parent=43 // pred_check
        %p392 = pneg %p166
      $region46: #{tpu_custom_call.1} parent=43 // pred_check_branch
        %394 = sbr.rel (%p392) target = $region48
      $region47: #{tpu_custom_call.1} parent=43 // pred_region
        _
      $region48: #{tpu_custom_call.1} parent=43 // pred_fallthru
        _
    $region44: #{tpu_custom_call.1} parent=5 // pred_fallthru
      _
    %p395 = scmp.le.s32.totalorder 2, %s12
    // Predicated region
    $region49: #{tpu_custom_call.1} parent=5 // pred_check
      %p396 = pneg %p395
    $region50: #{tpu_custom_call.1} parent=5 // pred_check_branch
      %398 = sbr.rel (%p396) target = $region52
    $region51: #{tpu_custom_call.1} parent=5 // pred_region
      %s399 = ssub.s32 %s12, 2
      // Predicated region
      $region53: #{tpu_custom_call.1} parent=51 // pred_check
        %p400 = pneg %p172
      $region54: #{tpu_custom_call.1} parent=51 // pred_check_branch
        %402 = sbr.rel (%p400) target = $region56
      $region55: #{tpu_custom_call.1} parent=51 // pred_region
        %p403 = scmp.lt.s32.totalorder %s18, 1
        %s404 = scalar_select %p403, %s18, 1
        %s405 = smul.addr %s404, 8
        %s406 = scalar_lea.vmem %s6, %s405
      $region56: #{tpu_custom_call.1} parent=51 // pred_fallthru
        _
    $region52: #{tpu_custom_call.1} parent=5 // pred_fallthru
      _
  $region6: #{tpu_custom_call.1} parent=0 // loop_footer
    %s16 = sadd.s32 1, %s12
  $region7: #{tpu_custom_call.1} parent=0 // loop_footer_branch
    %11 = sbr.rel target = $region3
  $region8: #{tpu_custom_call.1} parent=0 // loop_exit
    _

</llo_original>
